<compile_context>
chip_gen: v5e
topology: v5e:2x2
jax: 0.10.0
libtpu: 0.0.40
codegen_flags: <defaults>
</compile_context>

<pallas_src>
import jax
import jax.numpy as jnp
from jax.experimental import pallas as pl
from jax.experimental.pallas import tpu as pltpu

# Module hyperparameters (the PyTorch script leaves them as globals; pick
# small TPU-friendly values).
INPUT_SIZE = 32
HIDDEN_SIZE = 64
OUTPUT_SIZE = 16
BATCH = 256          # small demo batch; wrapper handles any batch size

LANE = 128           # TPU lane width
DEFAULT_BLOCK_M = 512  # batch tile (rows per grid step); sweep 512/1024/2048


def _round_up(n, m):
    return ((n + m - 1) // m) * m


def _pad2d(a, rows, cols):
    return jnp.pad(a, ((0, rows - a.shape[0]), (0, cols - a.shape[1])))


def mlp_kernel(x_ref, w1_ref, b1_ref, w2_ref, b2_ref, w3_ref, b3_ref, o_ref):
    # x arrives in its HBM dtype (f32); cast to the matmul dtype in-VMEM — the
    # VPU cast is free in this DMA-bound kernel and avoids an extra XLA pass
    # plus extra HBM traffic in the wrapper.
    x = x_ref[...].astype(w1_ref.dtype)
    # fc1 + tanh   (MXU matmul, f32 accumulation; bias add + tanh in f32)
    h = jnp.tanh(
        jnp.dot(x, w1_ref[...], preferred_element_type=jnp.float32)
        + b1_ref[...]
    )
    # fc2 + tanh
    h = jnp.tanh(
        jnp.dot(h.astype(w2_ref.dtype), w2_ref[...],
                preferred_element_type=jnp.float32)
        + b2_ref[...]
    )
    # fc10 + tanh -> store only the real OUTPUT_SIZE columns (no padded lanes)
    o_ref[...] = jnp.tanh(
        jnp.dot(h.astype(w3_ref.dtype), w3_ref[...],
                preferred_element_type=jnp.float32)
        + b3_ref[...]
    ).astype(o_ref.dtype)


def prepare_params(w1, b1, w2, b2, w3, b3, *, compute_dtype=jnp.bfloat16):
    """Pad / cast the weights ONCE (hoisted out of the forward pass).

    Only the hidden (contraction) dim is padded to the 128-lane width; x's
    feature dim (K) and the output dim (N) are left un-padded.  Zero padding
    is numerically exact: padded hidden cols are tanh(0)=0 and hit zero rows
    of the next weight.
    """
    in_f, hid = w1.shape
    out_f = w3.shape[1]
    hid_p = _round_up(hid, LANE)

    # Matmul inputs in compute_dtype (bf16 default is MXU-native on
    # v5e/v6e/v7x and halves weight DMA). Accumulation stays f32 in-kernel.
    w1_p = _pad2d(w1, in_f, hid_p).astype(compute_dtype)     # no K padding
    w2_p = _pad2d(w2, hid_p, hid_p).astype(compute_dtype)
    w3_p = _pad2d(w3, hid_p, out_f).astype(compute_dtype)    # no N padding
    # Biases stay f32: they are added to the f32 accumulator.
    b1_p = _pad2d(b1, 1, hid_p).astype(jnp.float32)
    b2_p = _pad2d(b2, 1, hid_p).astype(jnp.float32)
    b3_p = b3.reshape(1, out_f).astype(jnp.float32)
    return (w1_p, b1_p, w2_p, b2_p, w3_p, b3_p)


def mlp_forward(x, params, *, block_m=DEFAULT_BLOCK_M):
    """x: [B, in] (any float dtype); params from prepare_params()."""
    w1_p, b1_p, w2_p, b2_p, w3_p, b3_p = params
    batch, in_f = x.shape
    out_f = w3_p.shape[1]

    # Clamp the batch tile to the (sublane-rounded) batch so small batches run
    # as a single tile.  For v7x at large batch, keep the tile count >= 2
    # (ideally even) so both TensorCores are used.
    block_m = min(block_m, _round_up(batch, 8))
    batch_p = _round_up(batch, block_m)
    x_p = x if batch_p == batch else _pad2d(x, batch_p, in_f)

    grid = (batch_p // block_m,)

    # Activations: a new batch tile each grid step (last dim == full array dim,
    # which is legal, so x keeps its real 32-wide K and the output its real
    # 16-wide N — no padded HBM traffic).
    act_spec = lambda feat: pl.BlockSpec((block_m, feat), lambda i: (i, 0))
    # Weights / biases: same block every step -> stay resident in VMEM.
    res_spec = lambda shape: pl.BlockSpec(shape, lambda i: (0, 0))

    out = pl.pallas_call(
        mlp_kernel,
        out_shape=jax.ShapeDtypeStruct((batch_p, out_f), jnp.float32),
        grid=grid,
        in_specs=[
            act_spec(in_f),
            res_spec(w1_p.shape), res_spec(b1_p.shape),
            res_spec(w2_p.shape), res_spec(b2_p.shape),
            res_spec(w3_p.shape), res_spec(b3_p.shape),
        ],
        out_specs=act_spec(out_f),
        compiler_params=pltpu.CompilerParams(
            # Shard batch tiles over both v7x TensorCores.
            dimension_semantics=("parallel",),
            # >= every generation's scoped default (v5e: 16 MiB); raise
            # further if sweeping block_m >= ~4096 in f32.
            vmem_limit_bytes=32 * 1024 * 1024,
        ),
    )(x_p, w1_p, b1_p, w2_p, b2_p, w3_p, b3_p)

    return out if batch_p == batch else out[:batch]


def init_linear_params(key, in_features, out_features):
    """Deterministic init mimicking PyTorch nn.Linear default (Kaiming uniform)."""
    kw, kb = jax.random.split(key)
    bound = 1.0 / jnp.sqrt(in_features)
    # Stored transposed: [in_features, out_features]
    w_t = jax.random.uniform(
        kw, (in_features, out_features), jnp.float32, -bound, bound)
    b = jax.random.uniform(kb, (1, out_features), jnp.float32, -bound, bound)
    return w_t, b


if __name__ == "__main__":
    key = jax.random.PRNGKey(0)
    k_x, k1, k2, k3 = jax.random.split(key, 4)

    x = jax.random.normal(k_x, (BATCH, INPUT_SIZE), jnp.float32)
    w1, b1 = init_linear_params(k1, INPUT_SIZE, HIDDEN_SIZE)
    w2, b2 = init_linear_params(k2, HIDDEN_SIZE, HIDDEN_SIZE)
    w3, b3 = init_linear_params(k3, HIDDEN_SIZE, OUTPUT_SIZE)

    # Pad / cast weights once (bf16 matmul inputs, f32 accumulation).
    params = prepare_params(w1, b1, w2, b2, w3, b3)

    out = mlp_forward(x, params)
    jax.block_until_ready(out)

    # Reference with the same bf16-input / f32-accumulate contract as the kernel.
    def _emu_layer(a, w, b):
        return jnp.dot(a.astype(jnp.bfloat16), w.astype(jnp.bfloat16),
                       preferred_element_type=jnp.float32) + b

    ref = jnp.tanh(_emu_layer(
        jnp.tanh(_emu_layer(jnp.tanh(_emu_layer(x, w1, b1)), w2, b2)), w3, b3))
    assert out.shape == (BATCH, OUTPUT_SIZE)
    assert jnp.allclose(out, ref, atol=2e-3, rtol=2e-3)

    # Loose sanity check vs. full-f32 math (difference = bf16 input rounding).
    ref_f32 = jnp.tanh(jnp.tanh(jnp.tanh(x @ w1 + b1) @ w2 + b2) @ w3 + b3)
    assert jnp.allclose(out, ref_f32, atol=5e-2, rtol=5e-2)

    print("KERNEL_OK")
</pallas_src>

<mosaic_0001>
module attributes {stable_mosaic.version = 11 : i64} {
  func.func @mlp_kernel(%arg0: i32, %arg1: memref<256x32xf32, #tpu.memory_space<vmem>>, %arg2: memref<32x128xbf16, #tpu.memory_space<vmem>>, %arg3: memref<1x128xf32, #tpu.memory_space<vmem>>, %arg4: memref<128x128xbf16, #tpu.memory_space<vmem>>, %arg5: memref<1x128xf32, #tpu.memory_space<vmem>>, %arg6: memref<128x16xbf16, #tpu.memory_space<vmem>>, %arg7: memref<1x16xf32, #tpu.memory_space<vmem>>, %arg8: memref<256x16xf32, #tpu.memory_space<vmem>>) attributes {dimension_semantics = [#tpu.dimension_semantics<parallel>], iteration_bounds = array<i64: 1>, scalar_prefetch = 0 : i64, scratch_operands = 0 : i64, tpu.core_type = #tpu.core_type<tc>, window_params = [{transform_indices = @transform_0, window_bounds = array<i64: 256, 32>}, {pipeline_mode = #tpu.pipeline_mode<synchronous>, transform_indices = @transform_1, window_bounds = array<i64: 32, 128>}, {pipeline_mode = #tpu.pipeline_mode<synchronous>, transform_indices = @transform_2, window_bounds = array<i64: 1, 128>}, {pipeline_mode = #tpu.pipeline_mode<synchronous>, transform_indices = @transform_3, window_bounds = array<i64: 128, 128>}, {pipeline_mode = #tpu.pipeline_mode<synchronous>, transform_indices = @transform_4, window_bounds = array<i64: 1, 128>}, {pipeline_mode = #tpu.pipeline_mode<synchronous>, transform_indices = @transform_5, window_bounds = array<i64: 128, 16>}, {pipeline_mode = #tpu.pipeline_mode<synchronous>, transform_indices = @transform_6, window_bounds = array<i64: 1, 16>}, {transform_indices = @transform_7, window_bounds = array<i64: 256, 16>}]} {
    %c0 = arith.constant 0 : index
    %c0_0 = arith.constant 0 : index
    %0 = vector.load %arg1[%c0, %c0_0] : memref<256x32xf32, #tpu.memory_space<vmem>>, vector<256x32xf32>
    %1 = arith.truncf %0 : vector<256x32xf32> to vector<256x32xbf16>
    %c0_1 = arith.constant 0 : index
    %c0_2 = arith.constant 0 : index
    %2 = vector.load %arg2[%c0_1, %c0_2] : memref<32x128xbf16, #tpu.memory_space<vmem>>, vector<32x128xbf16>
    %cst = arith.constant dense<0.000000e+00> : vector<256x128xf32>
    %3 = tpu.matmul %1, %2, %cst {dimension_numbers = #tpu.dot_dimension_numbers<[1], [0], [0], [1], [0, 0, 1, 1], [], []>} : vector<256x32xbf16>, vector<32x128xbf16>, vector<256x128xf32> -> vector<256x128xf32>
    %c0_3 = arith.constant 0 : index
    %c0_4 = arith.constant 0 : index
    %4 = vector.load %arg3[%c0_3, %c0_4] : memref<1x128xf32, #tpu.memory_space<vmem>>, vector<1x128xf32>
    %5 = vector.broadcast %4 : vector<1x128xf32> to vector<256x128xf32>
    %6 = arith.addf %3, %5 : vector<256x128xf32>
    %7 = math.tanh %6 : vector<256x128xf32>
    %8 = arith.truncf %7 : vector<256x128xf32> to vector<256x128xbf16>
    %c0_5 = arith.constant 0 : index
    %c0_6 = arith.constant 0 : index
    %9 = vector.load %arg4[%c0_5, %c0_6] : memref<128x128xbf16, #tpu.memory_space<vmem>>, vector<128x128xbf16>
    %cst_7 = arith.constant dense<0.000000e+00> : vector<256x128xf32>
    %10 = tpu.matmul %8, %9, %cst_7 {dimension_numbers = #tpu.dot_dimension_numbers<[1], [0], [0], [1], [0, 0, 1, 1], [], []>} : vector<256x128xbf16>, vector<128x128xbf16>, vector<256x128xf32> -> vector<256x128xf32>
    %c0_8 = arith.constant 0 : index
    %c0_9 = arith.constant 0 : index
    %11 = vector.load %arg5[%c0_8, %c0_9] : memref<1x128xf32, #tpu.memory_space<vmem>>, vector<1x128xf32>
    %12 = vector.broadcast %11 : vector<1x128xf32> to vector<256x128xf32>
    %13 = arith.addf %10, %12 : vector<256x128xf32>
    %14 = math.tanh %13 : vector<256x128xf32>
    %15 = arith.truncf %14 : vector<256x128xf32> to vector<256x128xbf16>
    %c0_10 = arith.constant 0 : index
    %c0_11 = arith.constant 0 : index
    %16 = vector.load %arg6[%c0_10, %c0_11] : memref<128x16xbf16, #tpu.memory_space<vmem>>, vector<128x16xbf16>
    %cst_12 = arith.constant dense<0.000000e+00> : vector<256x16xf32>
    %17 = tpu.matmul %15, %16, %cst_12 {dimension_numbers = #tpu.dot_dimension_numbers<[1], [0], [0], [1], [0, 0, 1, 1], [], []>} : vector<256x128xbf16>, vector<128x16xbf16>, vector<256x16xf32> -> vector<256x16xf32>
    %c0_13 = arith.constant 0 : index
    %c0_14 = arith.constant 0 : index
    %18 = vector.load %arg7[%c0_13, %c0_14] : memref<1x16xf32, #tpu.memory_space<vmem>>, vector<1x16xf32>
    %19 = vector.broadcast %18 : vector<1x16xf32> to vector<256x16xf32>
    %20 = arith.addf %17, %19 : vector<256x16xf32>
    %21 = math.tanh %20 : vector<256x16xf32>
    %c0_15 = arith.constant 0 : index
    %c0_16 = arith.constant 0 : index
    %22 = vector.load %arg8[%c0_15, %c0_16] : memref<256x16xf32, #tpu.memory_space<vmem>>, vector<256x16xf32>
    tpu.vector_store %arg8[%c0_15, %c0_16], %21 {strides = array<i32>} : memref<256x16xf32, #tpu.memory_space<vmem>>, vector<256x16xf32>,
    return
  }
  func.func @transform_0(%arg0: i32) -> (i32, i32) {
    %c0_i32 = arith.constant 0 : i32
    %c0_i32_0 = arith.constant 0 : i32
    return %arg0, %c0_i32 : i32, i32
  }
  func.func @transform_1(%arg0: i32) -> (i32, i32) {
    %c0_i32 = arith.constant 0 : i32
    %c0_i32_0 = arith.constant 0 : i32
    %c0_i32_1 = arith.constant 0 : i32
    return %c0_i32, %c0_i32_0 : i32, i32
  }
  func.func @transform_2(%arg0: i32) -> (i32, i32) {
    %c0_i32 = arith.constant 0 : i32
    %c0_i32_0 = arith.constant 0 : i32
    %c0_i32_1 = arith.constant 0 : i32
    return %c0_i32, %c0_i32_0 : i32, i32
  }
  func.func @transform_3(%arg0: i32) -> (i32, i32) {
    %c0_i32 = arith.constant 0 : i32
    %c0_i32_0 = arith.constant 0 : i32
    %c0_i32_1 = arith.constant 0 : i32
    return %c0_i32, %c0_i32_0 : i32, i32
  }
  func.func @transform_4(%arg0: i32) -> (i32, i32) {
    %c0_i32 = arith.constant 0 : i32
    %c0_i32_0 = arith.constant 0 : i32
    %c0_i32_1 = arith.constant 0 : i32
    return %c0_i32, %c0_i32_0 : i32, i32
  }
  func.func @transform_5(%arg0: i32) -> (i32, i32) {
    %c0_i32 = arith.constant 0 : i32
    %c0_i32_0 = arith.constant 0 : i32
    %c0_i32_1 = arith.constant 0 : i32
    return %c0_i32, %c0_i32_0 : i32, i32
  }
  func.func @transform_6(%arg0: i32) -> (i32, i32) {
    %c0_i32 = arith.constant 0 : i32
    %c0_i32_0 = arith.constant 0 : i32
    %c0_i32_1 = arith.constant 0 : i32
    return %c0_i32, %c0_i32_0 : i32, i32
  }
  func.func @transform_7(%arg0: i32) -> (i32, i32) {
    %c0_i32 = arith.constant 0 : i32
    %c0_i32_0 = arith.constant 0 : i32
    return %arg0, %c0_i32 : i32, i32
  }
}

</mosaic_0001>

<llo_original>
// kernel: tpu_custom_call.1
$region0: #{tpu_custom_call.1}
  #allocation0 [shape = 'u32[]', space=smem, size = 0x4, offset = 0x4, fixed_abs, tag = 'smem constant byte address 0x4 - core index']
  #allocation1 [shape = 'u32[72,128]{1,0:T(1,128)}', space=vmem, size = 0x9000, scoped, tag = 'internal scratch']
  %s0 = inlined_call_operand.vmem [shape: f32[256,32], index: 0, kind: input, shape index: {}]
  %s1 = inlined_call_operand.vmem [shape: bf16[32,128], index: 1, kind: input, shape index: {}]
  %s2 = inlined_call_operand.vmem [shape: f32[1,128], index: 2, kind: input, shape index: {}]
  %s3 = inlined_call_operand.vmem [shape: bf16[128,128], index: 3, kind: input, shape index: {}]
  %s4 = inlined_call_operand.vmem [shape: f32[1,128], index: 4, kind: input, shape index: {}]
  %s5 = inlined_call_operand.vmem [shape: bf16[128,16], index: 5, kind: input, shape index: {}]
  %s6 = inlined_call_operand.vmem [shape: f32[1,16], index: 6, kind: input, shape index: {}]
  %s7 = inlined_call_operand.vmem [shape: f32[256,16], index: 7, kind: output, shape index: {}]
  %s8 = sld [smem:[#allocation0]]
  $region38: #{tpu_custom_call.1} parent=0
    _
  %s10 = ssub.s32 1, %s8
  %s11 = scalar_select 0, %s10, %s8
  // Predicated region
  $region2: #{tpu_custom_call.1} parent=0 // pred_check
    _
  $region3: #{tpu_custom_call.1} parent=0 // pred_check_branch
    %13 = sbr.rel (0) target = $region5
  $region4: #{tpu_custom_call.1} parent=0 // pred_region
    _
  $region5: #{tpu_custom_call.1} parent=0 // pred_fallthru
    _
  // Predicated region
  $region6: #{tpu_custom_call.1} parent=0 // pred_check
    _
  $region7: #{tpu_custom_call.1} parent=0 // pred_check_branch
    %15 = sbr.rel (0) target = $region9
  $region8: #{tpu_custom_call.1} parent=0 // pred_region
    _
  $region9: #{tpu_custom_call.1} parent=0 // pred_fallthru
    _
  // Predicated region
  $region10: #{tpu_custom_call.1} parent=0 // pred_check
    _
  $region11: #{tpu_custom_call.1} parent=0 // pred_check_branch
    %17 = sbr.rel (0) target = $region13
  $region12: #{tpu_custom_call.1} parent=0 // pred_region
    _
  $region13: #{tpu_custom_call.1} parent=0 // pred_fallthru
    _
  // Predicated region
  $region14: #{tpu_custom_call.1} parent=0 // pred_check
    _
  $region15: #{tpu_custom_call.1} parent=0 // pred_check_branch
    %19 = sbr.rel (0) target = $region17
  $region16: #{tpu_custom_call.1} parent=0 // pred_region
    _
  $region17: #{tpu_custom_call.1} parent=0 // pred_fallthru
    _
  // Predicated region
  $region18: #{tpu_custom_call.1} parent=0 // pred_check
    _
  $region19: #{tpu_custom_call.1} parent=0 // pred_check_branch
    %21 = sbr.rel (0) target = $region21
  $region20: #{tpu_custom_call.1} parent=0 // pred_region
    _
  $region21: #{tpu_custom_call.1} parent=0 // pred_fallthru
    _
  // Predicated region
  $region22: #{tpu_custom_call.1} parent=0 // pred_check
    _
  $region23: #{tpu_custom_call.1} parent=0 // pred_check_branch
    %23 = sbr.rel (0) target = $region25
  $region24: #{tpu_custom_call.1} parent=0 // pred_region
    _
  $region25: #{tpu_custom_call.1} parent=0 // pred_fallthru
    _
  // Predicated region
  $region26: #{tpu_custom_call.1} parent=0 // pred_check
    _
  $region27: #{tpu_custom_call.1} parent=0 // pred_check_branch
    %25 = sbr.rel (0) target = $region29
  $region28: #{tpu_custom_call.1} parent=0 // pred_region
    _
  $region29: #{tpu_custom_call.1} parent=0 // pred_fallthru
    _
  %v27 = vld [vmem:[%s0] sm:$0xff]
  %v28 = vld [vmem:[%s0 + $0x8] sm:$0xff]
  %v29 = vld [vmem:[%s0 + $0x10] sm:$0xff]
  %v30 = vld [vmem:[%s0 + $0x18] sm:$0xff]
  %v31 = vld [vmem:[%s0 + $0x20] sm:$0xff]
  %v32 = vld [vmem:[%s0 + $0x28] sm:$0xff]
  %v33 = vld [vmem:[%s0 + $0x30] sm:$0xff]
  %v34 = vld [vmem:[%s0 + $0x38] sm:$0xff]
  %v35 = vld [vmem:[%s0 + $0x40] sm:$0xff]
  %v36 = vld [vmem:[%s0 + $0x48] sm:$0xff]
  %v37 = vld [vmem:[%s0 + $0x50] sm:$0xff]
  %v38 = vld [vmem:[%s0 + $0x58] sm:$0xff]
  %v39 = vld [vmem:[%s0 + $0x60] sm:$0xff]
  %v40 = vld [vmem:[%s0 + $0x68] sm:$0xff]
  %v41 = vld [vmem:[%s0 + $0x70] sm:$0xff]
  %v42 = vld [vmem:[%s0 + $0x78] sm:$0xff]
  %v43 = vld [vmem:[%s0 + $0x80] sm:$0xff]
  %v44 = vld [vmem:[%s0 + $0x88] sm:$0xff]
  %v45 = vld [vmem:[%s0 + $0x90] sm:$0xff]
  %v46 = vld [vmem:[%s0 + $0x98] sm:$0xff]
  %v47 = vld [vmem:[%s0 + $0xa0] sm:$0xff]
  %v48 = vld [vmem:[%s0 + $0xa8] sm:$0xff]
  %v49 = vld [vmem:[%s0 + $0xb0] sm:$0xff]
  %v50 = vld [vmem:[%s0 + $0xb8] sm:$0xff]
  %v51 = vld [vmem:[%s0 + $0xc0] sm:$0xff]
  %v52 = vld [vmem:[%s0 + $0xc8] sm:$0xff]
  %v53 = vld [vmem:[%s0 + $0xd0] sm:$0xff]
  %v54 = vld [vmem:[%s0 + $0xd8] sm:$0xff]
  %v55 = vld [vmem:[%s0 + $0xe0] sm:$0xff]
  %v56 = vld [vmem:[%s0 + $0xe8] sm:$0xff]
  %v57 = vld [vmem:[%s0 + $0xf0] sm:$0xff]
  %v58 = vld [vmem:[%s0 + $0xf8] sm:$0xff]
  %v59 = vpack.c.bf16 %v28, %v27
  %v60 = vpack.c.bf16 %v30, %v29
  %v61 = vpack.c.bf16 %v32, %v31
  %v62 = vpack.c.bf16 %v34, %v33
  %v63 = vpack.c.bf16 %v36, %v35
  %v64 = vpack.c.bf16 %v38, %v37
  %v65 = vpack.c.bf16 %v40, %v39
  %v66 = vpack.c.bf16 %v42, %v41
  %v67 = vpack.c.bf16 %v44, %v43
  %v68 = vpack.c.bf16 %v46, %v45
  %v69 = vpack.c.bf16 %v48, %v47
  %v70 = vpack.c.bf16 %v50, %v49
  %v71 = vpack.c.bf16 %v52, %v51
  %v72 = vpack.c.bf16 %v54, %v53
  %v73 = vpack.c.bf16 %v56, %v55
  %v74 = vpack.c.bf16 %v58, %v57
  %v75 = vld [vmem:[%s1] sm:$0xf]
  %v76 = vld [vmem:[%s1 + $0x4] sm:$0xf]
  %v77 = vld [vmem:[%s1 + $0x8] sm:$0xf]
  %v78 = vld [vmem:[%s1 + $0xc] sm:$0xf]
  %v79 = vld [vmem:[%s2] sm:$0x1]
  %v81 = vperm.slane %v79, 0
  %v87 = vunpack.c.l.b16 %v75
  %v88 = vunpack.c.l.b16 %v76
  %v89 = vunpack.c.l.b16 %v77
  %v90 = vunpack.c.l.b16 %v78
  %v91 = vpack.c.b16 %v88, %v87
  %v92 = vpack.c.b16 %v90, %v89
  %vm95 = vcmask 261120
  %v97 = vsel %vm95, %v59, 0
  %v100 = vsel %vm95, %v60, 0
  %v103 = vsel %vm95, %v61, 0
  %v106 = vsel %vm95, %v62, 0
  %v109 = vsel %vm95, %v63, 0
  %v112 = vsel %vm95, %v64, 0
  %v115 = vsel %vm95, %v65, 0
  %v118 = vsel %vm95, %v66, 0
  %v121 = vsel %vm95, %v67, 0
  %v124 = vsel %vm95, %v68, 0
  %v127 = vsel %vm95, %v69, 0
  %v130 = vsel %vm95, %v70, 0
  %v133 = vsel %vm95, %v71, 0
  %v136 = vsel %vm95, %v72, 0
  %v139 = vsel %vm95, %v73, 0
  %v142 = vsel %vm95, %v74, 0
  %144 = vmatpush.bf16.msra.mxu0 0
  %145 = vmatpush.bf16.msra.mxu0 0
  %146 = vmatpush.bf16.msra.mxu0 0
  %147 = vmatpush.bf16.msra.mxu0 0
  %148 = vmatpush.bf16.msra.mxu0 0
  %149 = vmatpush.bf16.msra.mxu0 0
  %150 = vmatpush.bf16.msra.mxu0 %v92
  %151 = vmatpush.bf16.msra.mxu0 %v91
  %152 = vmatmul.bf16.gmra.mxu0 %v97
  %v153 = vpop.f32.mrf.mxu0
  %v154 = vadd.f32 %v81, %v153
  %v155 = vpop.f32.mrf.mxu0
  %v156 = vadd.f32 %v81, %v155
  %157 = vmatmul.bf16.gmra.mxu0 %v100
  %v158 = vpop.f32.mrf.mxu0
  %v159 = vadd.f32 %v81, %v158
  %v160 = vpop.f32.mrf.mxu0
  %v161 = vadd.f32 %v81, %v160
  %162 = vmatmul.bf16.gmra.mxu0 %v103
  %v163 = vpop.f32.mrf.mxu0
  %v164 = vadd.f32 %v81, %v163
  %v165 = vpop.f32.mrf.mxu0
  %v166 = vadd.f32 %v81, %v165
  %167 = vmatmul.bf16.gmra.mxu0 %v106
  %v168 = vpop.f32.mrf.mxu0
  %v169 = vadd.f32 %v81, %v168
  %v170 = vpop.f32.mrf.mxu0
  %v171 = vadd.f32 %v81, %v170
  %172 = vmatmul.bf16.gmra.mxu0 %v109
  %v173 = vpop.f32.mrf.mxu0
  %v174 = vadd.f32 %v81, %v173
  %v175 = vpop.f32.mrf.mxu0
  %v176 = vadd.f32 %v81, %v175
  %177 = vmatmul.bf16.gmra.mxu0 %v112
  %v178 = vpop.f32.mrf.mxu0
  %v179 = vadd.f32 %v81, %v178
  %v180 = vpop.f32.mrf.mxu0
  %v181 = vadd.f32 %v81, %v180
  %182 = vmatmul.bf16.gmra.mxu0 %v115
  %v183 = vpop.f32.mrf.mxu0
  %v184 = vadd.f32 %v81, %v183
  %v185 = vpop.f32.mrf.mxu0
  %v186 = vadd.f32 %v81, %v185
  %187 = vmatmul.bf16.gmra.mxu0 %v118
  %v188 = vpop.f32.mrf.mxu0
  %v189 = vadd.f32 %v81, %v188
  %v190 = vpop.f32.mrf.mxu0
  %v191 = vadd.f32 %v81, %v190
  %192 = vmatmul.bf16.gmra.mxu0 %v121
  %v193 = vpop.f32.mrf.mxu0
  %v194 = vadd.f32 %v81, %v193
  %v195 = vpop.f32.mrf.mxu0
  %v196 = vadd.f32 %v81, %v195
  %197 = vmatmul.bf16.gmra.mxu0 %v124
  %v198 = vpop.f32.mrf.mxu0
  %v199 = vadd.f32 %v81, %v198
  %v200 = vpop.f32.mrf.mxu0
  %v201 = vadd.f32 %v81, %v200
  %202 = vmatmul.bf16.gmra.mxu0 %v127
  %v203 = vpop.f32.mrf.mxu0
  %v204 = vadd.f32 %v81, %v203
  %v205 = vpop.f32.mrf.mxu0
  %v206 = vadd.f32 %v81, %v205
  %207 = vmatmul.bf16.gmra.mxu0 %v130
  %v208 = vpop.f32.mrf.mxu0
  %v209 = vadd.f32 %v81, %v208
  %v210 = vpop.f32.mrf.mxu0
  %v211 = vadd.f32 %v81, %v210
  %212 = vmatmul.bf16.gmra.mxu0 %v133
  %v213 = vpop.f32.mrf.mxu0
  %v214 = vadd.f32 %v81, %v213
  %v215 = vpop.f32.mrf.mxu0
  %v216 = vadd.f32 %v81, %v215
  %217 = vmatmul.bf16.gmra.mxu0 %v136
  %v218 = vpop.f32.mrf.mxu0
  %v219 = vadd.f32 %v81, %v218
  %v220 = vpop.f32.mrf.mxu0
  %v221 = vadd.f32 %v81, %v220
  %222 = vmatmul.bf16.gmra.mxu0 %v139
  %v223 = vpop.f32.mrf.mxu0
  %v224 = vadd.f32 %v81, %v223
  %v225 = vpop.f32.mrf.mxu0
  %v226 = vadd.f32 %v81, %v225
  %227 = vmatmul.bf16.gmra.mxu0 %v142
  %v228 = vpop.f32.mrf.mxu0
  %v229 = vadd.f32 %v81, %v228
  %v230 = vpop.f32.mrf.mxu0
  %v231 = vadd.f32 %v81, %v230
  %232 = vdwg.mxu0
  %v233 = vtanh.pop %v154
  %v234 = vtanh.pop %v156
  %v235 = vtanh.pop %v159
  %v236 = vtanh.pop %v161
  %v237 = vtanh.pop %v164
  %v238 = vtanh.pop %v166
  %v239 = vtanh.pop %v169
  %v240 = vtanh.pop %v171
  %v241 = vtanh.pop %v174
  %v242 = vtanh.pop %v176
  %v243 = vtanh.pop %v179
  %v244 = vtanh.pop %v181
  %v245 = vtanh.pop %v184
  %v246 = vtanh.pop %v186
  %v247 = vtanh.pop %v189
  %v248 = vtanh.pop %v191
  %v249 = vtanh.pop %v194
  %v250 = vtanh.pop %v196
  %v251 = vtanh.pop %v199
  %v252 = vtanh.pop %v201
  %v253 = vtanh.pop %v204
  %v254 = vtanh.pop %v206
  %v255 = vtanh.pop %v209
  %v256 = vtanh.pop %v211
  %v257 = vtanh.pop %v214
  %v258 = vtanh.pop %v216
  %v259 = vtanh.pop %v219
  %v260 = vtanh.pop %v221
  %v261 = vtanh.pop %v224
  %v262 = vtanh.pop %v226
  %v263 = vtanh.pop %v229
  %v264 = vtanh.pop %v231
  %v265 = vpack.c.bf16 %v234, %v233
  %v266 = vpack.c.bf16 %v236, %v235
  %v267 = vpack.c.bf16 %v238, %v237
  %v268 = vpack.c.bf16 %v240, %v239
  %v269 = vpack.c.bf16 %v242, %v241
  %v270 = vpack.c.bf16 %v244, %v243
  %v271 = vpack.c.bf16 %v246, %v245
  %v272 = vpack.c.bf16 %v248, %v247
  %v273 = vpack.c.bf16 %v250, %v249
  %v274 = vpack.c.bf16 %v252, %v251
  %v275 = vpack.c.bf16 %v254, %v253
  %v276 = vpack.c.bf16 %v256, %v255
  %v277 = vpack.c.bf16 %v258, %v257
  %v278 = vpack.c.bf16 %v260, %v259
  %v279 = vpack.c.bf16 %v262, %v261
  %v280 = vpack.c.bf16 %v264, %v263
  %v281 = vld [vmem:[%s3] sm:$0xf]
  %v282 = vld [vmem:[%s3 + $0x4] sm:$0xf]
  %v283 = vld [vmem:[%s3 + $0x8] sm:$0xf]
  %v284 = vld [vmem:[%s3 + $0xc] sm:$0xf]
  %v285 = vld [vmem:[%s3 + $0x10] sm:$0xf]
  %v286 = vld [vmem:[%s3 + $0x14] sm:$0xf]
  %v287 = vld [vmem:[%s3 + $0x18] sm:$0xf]
  %v288 = vld [vmem:[%s3 + $0x1c] sm:$0xf]
  %v289 = vld [vmem:[%s3 + $0x20] sm:$0xf]
  %v290 = vld [vmem:[%s3 + $0x24] sm:$0xf]
  %v291 = vld [vmem:[%s3 + $0x28] sm:$0xf]
  %v292 = vld [vmem:[%s3 + $0x2c] sm:$0xf]
  %v293 = vld [vmem:[%s3 + $0x30] sm:$0xf]
  %v294 = vld [vmem:[%s3 + $0x34] sm:$0xf]
  %v295 = vld [vmem:[%s3 + $0x38] sm:$0xf]
  %v296 = vld [vmem:[%s3 + $0x3c] sm:$0xf]
  %v297 = vld [vmem:[%s4] sm:$0x1]
  %v299 = vperm.slane %v297, 0
  %v317 = vunpack.c.l.b16 %v281
  %v318 = vunpack.c.l.b16 %v282
  %v319 = vunpack.c.l.b16 %v283
  %v320 = vunpack.c.l.b16 %v284
  %v321 = vunpack.c.l.b16 %v285
  %v322 = vunpack.c.l.b16 %v286
  %v323 = vunpack.c.l.b16 %v287
  %v324 = vunpack.c.l.b16 %v288
  %v325 = vunpack.c.l.b16 %v289
  %v326 = vunpack.c.l.b16 %v290
  %v327 = vunpack.c.l.b16 %v291
  %v328 = vunpack.c.l.b16 %v292
  %v329 = vunpack.c.l.b16 %v293
  %v330 = vunpack.c.l.b16 %v294
  %v331 = vunpack.c.l.b16 %v295
  %v332 = vunpack.c.l.b16 %v296
  %v333 = vpack.c.b16 %v318, %v317
  %v334 = vpack.c.b16 %v320, %v319
  %v335 = vpack.c.b16 %v322, %v321
  %v336 = vpack.c.b16 %v324, %v323
  %v337 = vpack.c.b16 %v326, %v325
  %v338 = vpack.c.b16 %v328, %v327
  %v339 = vpack.c.b16 %v330, %v329
  %v340 = vpack.c.b16 %v332, %v331
  %349 = vmatpush.bf16.msra.mxu0 %v340
  %350 = vmatpush.bf16.msra.mxu0 %v339
  %351 = vmatpush.bf16.msra.mxu0 %v338
  %352 = vmatpush.bf16.msra.mxu0 %v337
  %353 = vmatpush.bf16.msra.mxu0 %v336
  %354 = vmatpush.bf16.msra.mxu0 %v335
  %355 = vmatpush.bf16.msra.mxu0 %v334
  %356 = vmatpush.bf16.msra.mxu0 %v333
  %357 = vmatmul.bf16.gmra.mxu0 %v265
  %v358 = vpop.f32.mrf.mxu0
  %v359 = vadd.f32 %v299, %v358
  %v360 = vpop.f32.mrf.mxu0
  %v361 = vadd.f32 %v299, %v360
  %362 = vmatmul.bf16.gmra.mxu0 %v266
  %v363 = vpop.f32.mrf.mxu0
  %v364 = vadd.f32 %v299, %v363
  %v365 = vpop.f32.mrf.mxu0
  %v366 = vadd.f32 %v299, %v365
  %367 = vmatmul.bf16.gmra.mxu0 %v267
  %v368 = vpop.f32.mrf.mxu0
  %v369 = vadd.f32 %v299, %v368
  %v370 = vpop.f32.mrf.mxu0
  %v371 = vadd.f32 %v299, %v370
  %372 = vmatmul.bf16.gmra.mxu0 %v268
  %v373 = vpop.f32.mrf.mxu0
  %v374 = vadd.f32 %v299, %v373
  %v375 = vpop.f32.mrf.mxu0
  %v376 = vadd.f32 %v299, %v375
  %377 = vmatmul.bf16.gmra.mxu0 %v269
  %v378 = vpop.f32.mrf.mxu0
  %v379 = vadd.f32 %v299, %v378
  %v380 = vpop.f32.mrf.mxu0
  %v381 = vadd.f32 %v299, %v380
  %382 = vmatmul.bf16.gmra.mxu0 %v270
  %v383 = vpop.f32.mrf.mxu0
  %v384 = vadd.f32 %v299, %v383
  %v385 = vpop.f32.mrf.mxu0
  %v386 = vadd.f32 %v299, %v385
  %387 = vmatmul.bf16.gmra.mxu0 %v271
  %v388 = vpop.f32.mrf.mxu0
  %v389 = vadd.f32 %v299, %v388
  %v390 = vpop.f32.mrf.mxu0
  %v391 = vadd.f32 %v299, %v390
  %392 = vmatmul.bf16.gmra.mxu0 %v272
  %v393 = vpop.f32.mrf.mxu0
  %v394 = vadd.f32 %v299, %v393
  %v395 = vpop.f32.mrf.mxu0
  %v396 = vadd.f32 %v299, %v395
  %397 = vmatmul.bf16.gmra.mxu0 %v273
  %v398 = vpop.f32.mrf.mxu0
  %v399 = vadd.f32 %v299, %v398
  %v400 = vpop.f32.mrf.mxu0
  %v401 = vadd.f32 %v299, %v400
  %402 = vmatmul.bf16.gmra.mxu0 %v274
  %v403 = vpop.f32.mrf.mxu0
  %v404 = vadd.f32 %v299, %v403
  %v405 = vpop.f32.mrf.mxu0
  %v406 = vadd.f32 %v299, %v405
  %407 = vmatmul.bf16.gmra.mxu0 %v275
  %v408 = vpop.f32.mrf.mxu0
  %v409 = vadd.f32 %v299, %v408
  %v410 = vpop.f32.mrf.mxu0
  %v411 = vadd.f32 %v299, %v410
  %412 = vmatmul.bf16.gmra.mxu0 %v276
  %v413 = vpop.f32.mrf.mxu0
  %v414 = vadd.f32 %v299, %v413
  %v415 = vpop.f32.mrf.mxu0
  %v416 = vadd.f32 %v299, %v415
  %417 = vmatmul.bf16.gmra.mxu0 %v277
  %v418 = vpop.f32.mrf.mxu0
  %v419 = vadd.f32 %v299, %v418
  %v420 = vpop.f32.mrf.mxu0
  %v421 = vadd.f32 %v299, %v420
  %422 = vmatmul.bf16.gmra.mxu0 %v278
  %v423 = vpop.f32.mrf.mxu0
  %v424 = vadd.f32 %v299, %v423
  %v425 = vpop.f32.mrf.mxu0
  %v426 = vadd.f32 %v299, %v425
  %427 = vmatmul.bf16.gmra.mxu0 %v279
  %v428 = vpop.f32.mrf.mxu0
  %v429 = vadd.f32 %v299, %v428
  %v430 = vpop.f32.mrf.mxu0
  %v431 = vadd.f32 %v299, %v430
  %432 = vmatmul.bf16.gmra.mxu0 %v280
  %v433 = vpop.f32.mrf.mxu0
  %v434 = vadd.f32 %v299, %v433
  %v435 = vpop.f32.mrf.mxu0
  %v436 = vadd.f32 %v299, %v435
  %437 = vdwg.mxu0
  %v438 = vtanh.pop %v359
  %v439 = vtanh.pop %v361
  %v440 = vtanh.pop %v364
  %v441 = vtanh.pop %v366
  %v442 = vtanh.pop %v369
  %v443 = vtanh.pop %v371
  %v444 = vtanh.pop %v374
  %v445 = vtanh.pop %v376
  %v446 = vtanh.pop %v379
  %v447 = vtanh.pop %v381
  %v448 = vtanh.pop %v384
  %v449 = vtanh.pop %v386
  %v450 = vtanh.pop %v389
  %v451 = vtanh.pop %v391
  %v452 = vtanh.pop %v394
  %v453 = vtanh.pop %v396
  %v454 = vtanh.pop %v399
  %v455 = vtanh.pop %v401
  %v456 = vtanh.pop %v404
  %v457 = vtanh.pop %v406
  %v458 = vtanh.pop %v409
  %v459 = vtanh.pop %v411
  %v460 = vtanh.pop %v414
  %v461 = vtanh.pop %v416
  %v462 = vtanh.pop %v419
  %v463 = vtanh.pop %v421
  %v464 = vtanh.pop %v424
  %v465 = vtanh.pop %v426
  %v466 = vtanh.pop %v429
  %v467 = vtanh.pop %v431
  %v468 = vtanh.pop %v434
  %v469 = vtanh.pop %v436
  %v470 = vpack.c.bf16 %v439, %v438
  %v471 = vpack.c.bf16 %v441, %v440
  %v472 = vpack.c.bf16 %v443, %v442
  %v473 = vpack.c.bf16 %v445, %v444
  %v474 = vpack.c.bf16 %v447, %v446
  %v475 = vpack.c.bf16 %v449, %v448
  %v476 = vpack.c.bf16 %v451, %v450
  %v477 = vpack.c.bf16 %v453, %v452
  %v478 = vpack.c.bf16 %v455, %v454
  %v479 = vpack.c.bf16 %v457, %v456
  %v480 = vpack.c.bf16 %v459, %v458
  %v481 = vpack.c.bf16 %v461, %v460
  %v482 = vpack.c.bf16 %v463, %v462
  %v483 = vpack.c.bf16 %v465, %v464
  %v484 = vpack.c.bf16 %v467, %v466
  %v485 = vpack.c.bf16 %v469, %v468
  %v486 = vld [vmem:[%s5] sm:$0xf]
  %v487 = vld [vmem:[%s5 + $0x4] sm:$0xf]
  %v488 = vld [vmem:[%s5 + $0x8] sm:$0xf]
  %v489 = vld [vmem:[%s5 + $0xc] sm:$0xf]
  %v490 = vld [vmem:[%s5 + $0x10] sm:$0xf]
  %v491 = vld [vmem:[%s5 + $0x14] sm:$0xf]
  %v492 = vld [vmem:[%s5 + $0x18] sm:$0xf]
  %v493 = vld [vmem:[%s5 + $0x1c] sm:$0xf]
  %v494 = vld [vmem:[%s5 + $0x20] sm:$0xf]
  %v495 = vld [vmem:[%s5 + $0x24] sm:$0xf]
  %v496 = vld [vmem:[%s5 + $0x28] sm:$0xf]
  %v497 = vld [vmem:[%s5 + $0x2c] sm:$0xf]
  %v498 = vld [vmem:[%s5 + $0x30] sm:$0xf]
  %v499 = vld [vmem:[%s5 + $0x34] sm:$0xf]
  %v500 = vld [vmem:[%s5 + $0x38] sm:$0xf]
  %v501 = vld [vmem:[%s5 + $0x3c] sm:$0xf]
  %v502 = vld [vmem:[%s6] sm:$0x1]
  %v504 = vperm.slane %v502, 0
  %v522 = vunpack.c.l.b16 %v486
  %v523 = vunpack.c.l.b16 %v487
  %v524 = vunpack.c.l.b16 %v488
  %v525 = vunpack.c.l.b16 %v489
  %v526 = vunpack.c.l.b16 %v490
  %v527 = vunpack.c.l.b16 %v491
  %v528 = vunpack.c.l.b16 %v492
  %v529 = vunpack.c.l.b16 %v493
  %v530 = vunpack.c.l.b16 %v494
  %v531 = vunpack.c.l.b16 %v495
  %v532 = vunpack.c.l.b16 %v496
  %v533 = vunpack.c.l.b16 %v497
  %v534 = vunpack.c.l.b16 %v498
  %v535 = vunpack.c.l.b16 %v499
  %v536 = vunpack.c.l.b16 %v500
  %v537 = vunpack.c.l.b16 %v501
  %v538 = vpack.c.b16 %v523, %v522
  %v539 = vpack.c.b16 %v525, %v524
  %v540 = vpack.c.b16 %v527, %v526
  %v541 = vpack.c.b16 %v529, %v528
  %v542 = vpack.c.b16 %v531, %v530
  %v543 = vpack.c.b16 %v533, %v532
  %v544 = vpack.c.b16 %v535, %v534
  %v545 = vpack.c.b16 %v537, %v536
  %554 = vmatpush.bf16.msra.mxu0 %v545
  %555 = vmatpush.bf16.msra.mxu0 %v544
  %556 = vmatpush.bf16.msra.mxu0 %v543
  %557 = vmatpush.bf16.msra.mxu0 %v542
  %558 = vmatpush.bf16.msra.mxu0 %v541
  %559 = vmatpush.bf16.msra.mxu0 %v540
  %560 = vmatpush.bf16.msra.mxu0 %v539
  %561 = vmatpush.bf16.msra.mxu0 %v538
  %562 = vmatmul.bf16.gmra.mxu0 %v470
  %v563 = vpop.f32.mrf.mxu0
  %v564 = vadd.f32 %v504, %v563
  %v565 = vpop.f32.mrf.mxu0
  %v566 = vadd.f32 %v504, %v565
  %567 = vmatmul.bf16.gmra.mxu0 %v471
  %v568 = vpop.f32.mrf.mxu0
  %v569 = vadd.f32 %v504, %v568
  %v570 = vpop.f32.mrf.mxu0
  %v571 = vadd.f32 %v504, %v570
  %572 = vmatmul.bf16.gmra.mxu0 %v472
  %v573 = vpop.f32.mrf.mxu0
  %v574 = vadd.f32 %v504, %v573
  %v575 = vpop.f32.mrf.mxu0
  %v576 = vadd.f32 %v504, %v575
  %577 = vmatmul.bf16.gmra.mxu0 %v473
  %v578 = vpop.f32.mrf.mxu0
  %v579 = vadd.f32 %v504, %v578
  %v580 = vpop.f32.mrf.mxu0
  %v581 = vadd.f32 %v504, %v580
  %582 = vmatmul.bf16.gmra.mxu0 %v474
  %v583 = vpop.f32.mrf.mxu0
  %v584 = vadd.f32 %v504, %v583
  %v585 = vpop.f32.mrf.mxu0
  %v586 = vadd.f32 %v504, %v585
  %587 = vmatmul.bf16.gmra.mxu0 %v475
  %v588 = vpop.f32.mrf.mxu0
  %v589 = vadd.f32 %v504, %v588
  %v590 = vpop.f32.mrf.mxu0
  %v591 = vadd.f32 %v504, %v590
  %592 = vmatmul.bf16.gmra.mxu0 %v476
  %v593 = vpop.f32.mrf.mxu0
  %v594 = vadd.f32 %v504, %v593
  %v595 = vpop.f32.mrf.mxu0
  %v596 = vadd.f32 %v504, %v595
  %597 = vmatmul.bf16.gmra.mxu0 %v477
  %v598 = vpop.f32.mrf.mxu0
  %v599 = vadd.f32 %v504, %v598
  %v600 = vpop.f32.mrf.mxu0
  %v601 = vadd.f32 %v504, %v600
  %602 = vmatmul.bf16.gmra.mxu0 %v478
  %v603 = vpop.f32.mrf.mxu0
  %v604 = vadd.f32 %v504, %v603
  %v605 = vpop.f32.mrf.mxu0
  %v606 = vadd.f32 %v504, %v605
  %607 = vmatmul.bf16.gmra.mxu0 %v479
  %v608 = vpop.f32.mrf.mxu0
  %v609 = vadd.f32 %v504, %v608
  %v610 = vpop.f32.mrf.mxu0
  %v611 = vadd.f32 %v504, %v610
  %612 = vmatmul.bf16.gmra.mxu0 %v480
  %v613 = vpop.f32.mrf.mxu0
  %v614 = vadd.f32 %v504, %v613
  %v615 = vpop.f32.mrf.mxu0
  %v616 = vadd.f32 %v504, %v615
  %617 = vmatmul.bf16.gmra.mxu0 %v481
  %v618 = vpop.f32.mrf.mxu0
  %v619 = vadd.f32 %v504, %v618
  %v620 = vpop.f32.mrf.mxu0
  %v621 = vadd.f32 %v504, %v620
  %622 = vmatmul.bf16.gmra.mxu0 %v482
  %v623 = vpop.f32.mrf.mxu0
  %v624 = vadd.f32 %v504, %v623
  %v625 = vpop.f32.mrf.mxu0
  %v626 = vadd.f32 %v504, %v625
  %627 = vmatmul.bf16.gmra.mxu0 %v483
  %v628 = vpop.f32.mrf.mxu0
  %v629 = vadd.f32 %v504, %v628
  %v630 = vpop.f32.mrf.mxu0
  %v631 = vadd.f32 %v504, %v630
  %632 = vmatmul.bf16.gmra.mxu0 %v484
  %v633 = vpop.f32.mrf.mxu0
  %v634 = vadd.f32 %v504, %v633
  %v635 = vpop.f32.mrf.mxu0
  %v636 = vadd.f32 %v504, %v635
  %637 = vmatmul.bf16.gmra.mxu0 %v485
  %v638 = vpop.f32.mrf.mxu0
  %v639 = vadd.f32 %v504, %v638
  %v640 = vpop.f32.mrf.mxu0
  %v641 = vadd.f32 %v504, %v640
  %642 = vdwg.mxu0
  %v643 = vtanh.pop %v564
  %v644 = vtanh.pop %v566
  %v645 = vtanh.pop %v569
  %v646 = vtanh.pop %v571
  %v647 = vtanh.pop %v574
  %v648 = vtanh.pop %v576
  %v649 = vtanh.pop %v579
  %v650 = vtanh.pop %v581
  %v651 = vtanh.pop %v584
  %v652 = vtanh.pop %v586
  %v653 = vtanh.pop %v589
  %v654 = vtanh.pop %v591
  %v655 = vtanh.pop %v594
  %v656 = vtanh.pop %v596
  %v657 = vtanh.pop %v599
  %v658 = vtanh.pop %v601
  %v659 = vtanh.pop %v604
  %v660 = vtanh.pop %v606
  %v661 = vtanh.pop %v609
  %v662 = vtanh.pop %v611
  %v663 = vtanh.pop %v614
  %v664 = vtanh.pop %v616
  %v665 = vtanh.pop %v619
  %v666 = vtanh.pop %v621
  %v667 = vtanh.pop %v624
  %v668 = vtanh.pop %v626
  %v669 = vtanh.pop %v629
  %v670 = vtanh.pop %v631
  %v671 = vtanh.pop %v634
  %v672 = vtanh.pop %v636
  %v673 = vtanh.pop %v639
  %v674 = vtanh.pop %v641
  %vm675 = vcmask 130048
  %676 = vst.msk [vmem:[%s7] sm:$0xff] %vm675, %v643
  %677 = vst.msk [vmem:[%s7 + $0x8] sm:$0xff] %vm675, %v644
  %678 = vst.msk [vmem:[%s7 + $0x10] sm:$0xff] %vm675, %v645
  %679 = vst.msk [vmem:[%s7 + $0x18] sm:$0xff] %vm675, %v646
  %680 = vst.msk [vmem:[%s7 + $0x20] sm:$0xff] %vm675, %v647
  %681 = vst.msk [vmem:[%s7 + $0x28] sm:$0xff] %vm675, %v648
  %682 = vst.msk [vmem:[%s7 + $0x30] sm:$0xff] %vm675, %v649
  %683 = vst.msk [vmem:[%s7 + $0x38] sm:$0xff] %vm675, %v650
  %684 = vst.msk [vmem:[%s7 + $0x40] sm:$0xff] %vm675, %v651
  %685 = vst.msk [vmem:[%s7 + $0x48] sm:$0xff] %vm675, %v652
  %686 = vst.msk [vmem:[%s7 + $0x50] sm:$0xff] %vm675, %v653
  %687 = vst.msk [vmem:[%s7 + $0x58] sm:$0xff] %vm675, %v654
  %688 = vst.msk [vmem:[%s7 + $0x60] sm:$0xff] %vm675, %v655
  %689 = vst.msk [vmem:[%s7 + $0x68] sm:$0xff] %vm675, %v656
  %690 = vst.msk [vmem:[%s7 + $0x70] sm:$0xff] %vm675, %v657
  %691 = vst.msk [vmem:[%s7 + $0x78] sm:$0xff] %vm675, %v658
  %692 = vst.msk [vmem:[%s7 + $0x80] sm:$0xff] %vm675, %v659
  %693 = vst.msk [vmem:[%s7 + $0x88] sm:$0xff] %vm675, %v660
  %694 = vst.msk [vmem:[%s7 + $0x90] sm:$0xff] %vm675, %v661
  %695 = vst.msk [vmem:[%s7 + $0x98] sm:$0xff] %vm675, %v662
  %696 = vst.msk [vmem:[%s7 + $0xa0] sm:$0xff] %vm675, %v663
  %697 = vst.msk [vmem:[%s7 + $0xa8] sm:$0xff] %vm675, %v664
  %698 = vst.msk [vmem:[%s7 + $0xb0] sm:$0xff] %vm675, %v665
  %699 = vst.msk [vmem:[%s7 + $0xb8] sm:$0xff] %vm675, %v666
  %700 = vst.msk [vmem:[%s7 + $0xc0] sm:$0xff] %vm675, %v667
  %701 = vst.msk [vmem:[%s7 + $0xc8] sm:$0xff] %vm675, %v668
  %702 = vst.msk [vmem:[%s7 + $0xd0] sm:$0xff] %vm675, %v669
  %703 = vst.msk [vmem:[%s7 + $0xd8] sm:$0xff] %vm675, %v670
  %704 = vst.msk [vmem:[%s7 + $0xe0] sm:$0xff] %vm675, %v671
  %705 = vst.msk [vmem:[%s7 + $0xe8] sm:$0xff] %vm675, %v672
  %706 = vst.msk [vmem:[%s7 + $0xf0] sm:$0xff] %vm675, %v673
  %707 = vst.msk [vmem:[%s7 + $0xf8] sm:$0xff] %vm675, %v674
  // Predicated region
  $region30: #{tpu_custom_call.1} parent=0 // pred_check
    _
  $region31: #{tpu_custom_call.1} parent=0 // pred_check_branch
    %709 = sbr.rel (0) target = $region33
  $region32: #{tpu_custom_call.1} parent=0 // pred_region
    _
  $region33: #{tpu_custom_call.1} parent=0 // pred_fallthru
    _
  // Predicated region
  $region34: #{tpu_custom_call.1} parent=0 // pred_check
    _
  $region35: #{tpu_custom_call.1} parent=0 // pred_check_branch
    %711 = sbr.rel (0) target = $region37
  $region36: #{tpu_custom_call.1} parent=0 // pred_region
    _
  $region37: #{tpu_custom_call.1} parent=0 // pred_fallthru
    _

</llo_original>
